<compile_context>
chip_gen: v7x
topology: tpu7x:2x2x1
jax: 0.10.0
libtpu: 0.0.40
codegen_flags: <defaults>
</compile_context>

<pallas_src>
import functools

import jax
import jax.numpy as jnp
from jax import lax
from jax.experimental import pallas as pl
from jax.experimental.pallas import tpu as pltpu


def _round_up(x, m):
    return ((x + m - 1) // m) * m


def _rel_pos_kernel(rel_pos_ref, o_ref, idx_ref, *, max_rel_pos, num_buckets,
                    tm, tn):
    # rel_pos_ref: (num_heads, num_buckets) f32 in SMEM
    # o_ref:       (1, tm, tn) output block for (head h, row tile i, col tile j)
    # idx_ref:     (tm, tn) int32 VMEM scratch, persists across the head loop
    i = pl.program_id(0)
    j = pl.program_id(1)
    h = pl.program_id(2)

    row0 = i * tm
    col0 = j * tn
    # rel = col - row over this tile
    min_rel = col0 - (row0 + tm - 1)
    max_rel = (col0 + tn - 1) - row0

    hi_band = min_rel >= max_rel_pos      # whole tile clips to +max_rel_pos
    lo_band = max_rel <= -max_rel_pos     # whole tile clips to -max_rel_pos
    in_band = jnp.logical_not(jnp.logical_or(hi_band, lo_band))

    # ---- Off-band fast path: constant fill, no index math at all. ----
    @pl.when(hi_band)
    def _():
        o_ref[0] = jnp.full((tm, tn), rel_pos_ref[h, num_buckets - 1],
                            dtype=o_ref.dtype)

    @pl.when(lo_band)
    def _():
        o_ref[0] = jnp.full((tm, tn), rel_pos_ref[h, 0], dtype=o_ref.dtype)

    # ---- Band path: index math done once per (i, j) tile, reused per head. ----
    @pl.when(jnp.logical_and(in_band, h == 0))
    def _():
        r = lax.broadcasted_iota(jnp.int32, (tm, tn), 0) + row0
        c = lax.broadcasted_iota(jnp.int32, (tm, tn), 1) + col0
        idx_ref[...] = jnp.clip(c - r, -max_rel_pos, max_rel_pos) + max_rel_pos

    @pl.when(in_band)
    def _():
        idx = idx_ref[...]
        # Read the per-head bucket scalars once, outside the select chain.
        vals = [rel_pos_ref[h, k] for k in range(num_buckets)]
        out = jnp.full((tm, tn), vals[0], dtype=jnp.float32)
        # Tiny unrolled select chain (bucket 0 is the init value).
        # TODO(synk): for large num_buckets (>~32) switch to a one-hot MXU
        # matmul or a shifted-diagonal fill; the VALU chain stops scaling there.
        for k in range(1, num_buckets):
            out = jnp.where(idx == k, vals[k], out)
        o_ref[0] = out.astype(o_ref.dtype)


@functools.partial(
    jax.jit, static_argnames=("seq_len", "max_rel_pos", "tm_cap", "tn_cap"))
def relative_pos_enc(rel_pos, seq_len, max_rel_pos, tm_cap=256, tn_cap=1024):
    """rel_pos: (num_heads, 2*max_rel_pos+1) -> (num_heads, seq_len, seq_len)."""
    num_heads, num_buckets = rel_pos.shape
    assert num_buckets == 2 * max_rel_pos + 1

    out_dtype = rel_pos.dtype
    table = rel_pos.astype(jnp.float32)   # SMEM is 32-bit scalar memory

    # Lane-dense tiles: sublane dim multiple of 8, lane dim multiple of 128.
    tm = min(_round_up(seq_len, 8), tm_cap)
    tn = min(_round_up(seq_len, 128), tn_cap)
    sm = _round_up(seq_len, tm)    # padded rows
    sn = _round_up(seq_len, tn)    # padded cols
    grid = (sm // tm, sn // tn, num_heads)

    kernel = functools.partial(_rel_pos_kernel, max_rel_pos=max_rel_pos,
                               num_buckets=num_buckets, tm=tm, tn=tn)

    out = pl.pallas_call(
        kernel,
        out_shape=jax.ShapeDtypeStruct((num_heads, sm, sn), out_dtype),
        grid_spec=pltpu.PrefetchScalarGridSpec(
            num_scalar_prefetch=0,
            grid=grid,
            in_specs=[
                # Whole bucket table in SMEM (few hundred bytes); constant
                # across the grid, read with a dynamic head index.
                pl.BlockSpec(memory_space=pltpu.MemorySpace.SMEM),
            ],
            out_specs=pl.BlockSpec((1, tm, tn), lambda i, j, h: (h, i, j)),
            scratch_shapes=[pltpu.VMEM((tm, tn), jnp.int32)],
        ),
        compiler_params=pltpu.CompilerParams(
            dimension_semantics=("parallel", "parallel", "arbitrary")),
    )(table)

    if (sm, sn) != (seq_len, seq_len):
        out = out[:, :seq_len, :seq_len]
    return out


def _reference(rel_pos, seq_len, max_rel_pos):
    positions = jnp.arange(seq_len)
    rel = positions[None, :] - positions[:, None]
    idx = jnp.clip(rel, -max_rel_pos, max_rel_pos) + max_rel_pos
    return rel_pos[:, idx]


if __name__ == "__main__":
    max_rel_pos = 2
    num_heads = 8

    key = jax.random.PRNGKey(0)
    rel_pos = jax.random.normal(
        key, (num_heads, 2 * max_rel_pos + 1), dtype=jnp.float32)

    # 1) The module's shipped shape (seq_len=10): one lane-dense padded block.
    seq_len = 10
    out = jax.block_until_ready(relative_pos_enc(rel_pos, seq_len, max_rel_pos))
    ref = _reference(rel_pos, seq_len, max_rel_pos)
    assert out.shape == (num_heads, seq_len, seq_len)
    assert jnp.array_equal(out, ref), "mismatch vs reference (seq_len=10)"

    # 2) A multi-tile shape with small tile caps so the off-band constant-fill
    #    fast path and the cross-head pos_idx reuse are actually exercised.
    seq_len2 = 160
    out2 = jax.block_until_ready(
        relative_pos_enc(rel_pos, seq_len2, max_rel_pos, tm_cap=8, tn_cap=128))
    ref2 = _reference(rel_pos, seq_len2, max_rel_pos)
    assert out2.shape == (num_heads, seq_len2, seq_len2)
    assert jnp.array_equal(out2, ref2), "mismatch vs reference (seq_len=160)"

    print("KERNEL_OK")
</pallas_src>

<mosaic_0001>
module attributes {stable_mosaic.version = 11 : i64} {
  func.func @_rel_pos_kernel(%arg0: i32, %arg1: i32, %arg2: i32, %arg3: memref<8x5xf32, #tpu.memory_space<smem>>, %arg4: memref<1x16x128xf32, #tpu.memory_space<vmem>>, %arg5: memref<16x128xi32, #tpu.memory_space<vmem>>) attributes {dimension_semantics = [#tpu.dimension_semantics<parallel>, #tpu.dimension_semantics<parallel>, #tpu.dimension_semantics<arbitrary>], iteration_bounds = array<i64: 1, 1, 8>, scalar_prefetch = 0 : i64, scratch_operands = 1 : i64, tpu.core_type = #tpu.core_type<tc>, window_params = [{transform_indices = @transform_0, window_bounds = array<i64: 8, 5>}, {transform_indices = @transform_1, window_bounds = array<i64: 1, 16, 128>}]} {
    %c16_i32 = arith.constant 16 : i32
    %0 = arith.muli %arg0, %c16_i32 : i32
    %c128_i32 = arith.constant 128 : i32
    %1 = arith.muli %arg1, %c128_i32 : i32
    %c16_i32_0 = arith.constant 16 : i32
    %2 = arith.addi %0, %c16_i32_0 : i32
    %c1_i32 = arith.constant 1 : i32
    %3 = arith.subi %2, %c1_i32 : i32
    %4 = arith.subi %1, %3 : i32
    %c128_i32_1 = arith.constant 128 : i32
    %5 = arith.addi %1, %c128_i32_1 : i32
    %c1_i32_2 = arith.constant 1 : i32
    %6 = arith.subi %5, %c1_i32_2 : i32
    %7 = arith.subi %6, %0 : i32
    %c2_i32 = arith.constant 2 : i32
    %8 = arith.cmpi sge, %4, %c2_i32 : i32
    %c-2_i32 = arith.constant -2 : i32
    %9 = arith.cmpi sle, %7, %c-2_i32 : i32
    %10 = arith.ori %8, %9 : i1
    %true = arith.constant true
    %11 = arith.xori %10, %true : i1
    %12 = arith.extui %8 : i1 to i32
    %c0_i32 = arith.constant 0 : i32
    %13 = arith.cmpi ne, %12, %c0_i32 : i32
    scf.if %13 {
      %22 = arith.index_cast %arg2 : i32 to index
      %c4 = arith.constant 4 : index
      %23 = memref.load %arg3[%22, %c4] : memref<8x5xf32, #tpu.memory_space<smem>>
      %24 = vector.broadcast %23 : f32 to vector<16x128xf32>
      %c0 = arith.constant 0 : index
      %c0_7 = arith.constant 0 : index
      %c0_8 = arith.constant 0 : index
      %25 = vector.load %arg4[%c0, %c0_7, %c0_8] : memref<1x16x128xf32, #tpu.memory_space<vmem>>, vector<1x16x128xf32>
      %26 = vector.shape_cast %25 : vector<1x16x128xf32> to vector<16x128xf32>
      %27 = vector.shape_cast %24 : vector<16x128xf32> to vector<1x16x128xf32>
      tpu.vector_store %arg4[%c0, %c0_7, %c0_8], %27 {strides = array<i32>} : memref<1x16x128xf32, #tpu.memory_space<vmem>>, vector<1x16x128xf32>,
    } else {
    }
    %14 = arith.extui %9 : i1 to i32
    %c0_i32_3 = arith.constant 0 : i32
    %15 = arith.cmpi ne, %14, %c0_i32_3 : i32
    scf.if %15 {
      %22 = arith.index_cast %arg2 : i32 to index
      %c0 = arith.constant 0 : index
      %23 = memref.load %arg3[%22, %c0] : memref<8x5xf32, #tpu.memory_space<smem>>
      %24 = vector.broadcast %23 : f32 to vector<16x128xf32>
      %c0_7 = arith.constant 0 : index
      %c0_8 = arith.constant 0 : index
      %c0_9 = arith.constant 0 : index
      %25 = vector.load %arg4[%c0_7, %c0_8, %c0_9] : memref<1x16x128xf32, #tpu.memory_space<vmem>>, vector<1x16x128xf32>
      %26 = vector.shape_cast %25 : vector<1x16x128xf32> to vector<16x128xf32>
      %27 = vector.shape_cast %24 : vector<16x128xf32> to vector<1x16x128xf32>
      tpu.vector_store %arg4[%c0_7, %c0_8, %c0_9], %27 {strides = array<i32>} : memref<1x16x128xf32, #tpu.memory_space<vmem>>, vector<1x16x128xf32>,
    } else {
    }
    %c0_i32_4 = arith.constant 0 : i32
    %16 = arith.cmpi eq, %arg2, %c0_i32_4 : i32
    %17 = arith.andi %11, %16 : i1
    %18 = arith.extui %17 : i1 to i32
    %c0_i32_5 = arith.constant 0 : i32
    %19 = arith.cmpi ne, %18, %c0_i32_5 : i32
    scf.if %19 {
      %22 = tpu.iota {dimensions = array<i32: 0>} : vector<16x128xi32>
      %23 = vector.broadcast %0 : i32 to vector<16x128xi32>
      %24 = arith.addi %22, %23 : vector<16x128xi32>
      %25 = tpu.iota {dimensions = array<i32: 1>} : vector<16x128xi32>
      %26 = vector.broadcast %1 : i32 to vector<16x128xi32>
      %27 = arith.addi %25, %26 : vector<16x128xi32>
      %28 = arith.subi %27, %24 : vector<16x128xi32>
      %c-2_i32_7 = arith.constant -2 : i32
      %c2_i32_8 = arith.constant 2 : i32
      %29 = vector.broadcast %c-2_i32_7 : i32 to vector<16x128xi32>
      %30 = arith.maxsi %29, %28 : vector<16x128xi32>
      %31 = vector.broadcast %c2_i32_8 : i32 to vector<16x128xi32>
      %32 = arith.minsi %31, %30 : vector<16x128xi32>
      %c2_i32_9 = arith.constant 2 : i32
      %33 = vector.broadcast %c2_i32_9 : i32 to vector<16x128xi32>
      %34 = arith.addi %32, %33 : vector<16x128xi32>
      %c0 = arith.constant 0 : index
      %c0_10 = arith.constant 0 : index
      %35 = vector.load %arg5[%c0, %c0_10] : memref<16x128xi32, #tpu.memory_space<vmem>>, vector<16x128xi32>
      tpu.vector_store %arg5[%c0, %c0_10], %34 {strides = array<i32>} : memref<16x128xi32, #tpu.memory_space<vmem>>, vector<16x128xi32>,
    } else {
    }
    %20 = arith.extui %11 : i1 to i32
    %c0_i32_6 = arith.constant 0 : i32
    %21 = arith.cmpi ne, %20, %c0_i32_6 : i32
    scf.if %21 {
      %c0 = arith.constant 0 : index
      %c0_7 = arith.constant 0 : index
      %22 = vector.load %arg5[%c0, %c0_7] : memref<16x128xi32, #tpu.memory_space<vmem>>, vector<16x128xi32>
      %23 = arith.index_cast %arg2 : i32 to index
      %c0_8 = arith.constant 0 : index
      %24 = memref.load %arg3[%23, %c0_8] : memref<8x5xf32, #tpu.memory_space<smem>>
      %25 = arith.index_cast %arg2 : i32 to index
      %c1 = arith.constant 1 : index
      %26 = memref.load %arg3[%25, %c1] : memref<8x5xf32, #tpu.memory_space<smem>>
      %27 = arith.index_cast %arg2 : i32 to index
      %c2 = arith.constant 2 : index
      %28 = memref.load %arg3[%27, %c2] : memref<8x5xf32, #tpu.memory_space<smem>>
      %29 = arith.index_cast %arg2 : i32 to index
      %c3 = arith.constant 3 : index
      %30 = memref.load %arg3[%29, %c3] : memref<8x5xf32, #tpu.memory_space<smem>>
      %31 = arith.index_cast %arg2 : i32 to index
      %c4 = arith.constant 4 : index
      %32 = memref.load %arg3[%31, %c4] : memref<8x5xf32, #tpu.memory_space<smem>>
      %33 = vector.broadcast %24 : f32 to vector<16x128xf32>
      %c1_i32_9 = arith.constant 1 : i32
      %34 = vector.broadcast %c1_i32_9 : i32 to vector<16x128xi32>
      %35 = arith.cmpi eq, %22, %34 : vector<16x128xi32>
      %36 = vector.broadcast %26 : f32 to vector<16x128xf32>
      %37 = arith.select %35, %36, %33 : vector<16x128xi1>, vector<16x128xf32>
      %c2_i32_10 = arith.constant 2 : i32
      %38 = vector.broadcast %c2_i32_10 : i32 to vector<16x128xi32>
      %39 = arith.cmpi eq, %22, %38 : vector<16x128xi32>
      %40 = vector.broadcast %28 : f32 to vector<16x128xf32>
      %41 = arith.select %39, %40, %37 : vector<16x128xi1>, vector<16x128xf32>
      %c3_i32 = arith.constant 3 : i32
      %42 = vector.broadcast %c3_i32 : i32 to vector<16x128xi32>
      %43 = arith.cmpi eq, %22, %42 : vector<16x128xi32>
      %44 = vector.broadcast %30 : f32 to vector<16x128xf32>
      %45 = arith.select %43, %44, %41 : vector<16x128xi1>, vector<16x128xf32>
      %c4_i32 = arith.constant 4 : i32
      %46 = vector.broadcast %c4_i32 : i32 to vector<16x128xi32>
      %47 = arith.cmpi eq, %22, %46 : vector<16x128xi32>
      %48 = vector.broadcast %32 : f32 to vector<16x128xf32>
      %49 = arith.select %47, %48, %45 : vector<16x128xi1>, vector<16x128xf32>
      %c0_11 = arith.constant 0 : index
      %c0_12 = arith.constant 0 : index
      %c0_13 = arith.constant 0 : index
      %50 = vector.load %arg4[%c0_11, %c0_12, %c0_13] : memref<1x16x128xf32, #tpu.memory_space<vmem>>, vector<1x16x128xf32>
      %51 = vector.shape_cast %50 : vector<1x16x128xf32> to vector<16x128xf32>
      %52 = vector.shape_cast %49 : vector<16x128xf32> to vector<1x16x128xf32>
      tpu.vector_store %arg4[%c0_11, %c0_12, %c0_13], %52 {strides = array<i32>} : memref<1x16x128xf32, #tpu.memory_space<vmem>>, vector<1x16x128xf32>,
    } else {
    }
    return
  }
  func.func @transform_0(%arg0: i32, %arg1: i32, %arg2: i32) -> (i32, i32) {
    %c0_i32 = arith.constant 0 : i32
    %c0_i32_0 = arith.constant 0 : i32
    %c0_i32_1 = arith.constant 0 : i32
    return %c0_i32, %c0_i32_0 : i32, i32
  }
  func.func @transform_1(%arg0: i32, %arg1: i32, %arg2: i32) -> (i32, i32, i32) {
    %c0_i32 = arith.constant 0 : i32
    return %arg2, %arg0, %arg1 : i32, i32, i32
  }
}

</mosaic_0001>

<llo_original>
// kernel: relative_pos_enc.1
$region0: #{relative_pos_enc.1}
  #allocation0 [shape = 'u32[]', space=smem, size = 0x4, offset = 0x4, fixed_abs, tag = 'smem constant byte address 0x4 - core index']
  #allocation1 [shape = 'u32[144,128]{1,0:T(1,128)}', space=vmem, size = 0x12000, scoped, tag = 'internal scratch']
  #allocation2 [shape = 's32[16,128]{1,0:T(8,128)}', space=vmem, size = 0x2000, scoped, tag = 'scratch operand']
  %s0 = inlined_call_operand.hbm [shape: f32[8,5], index: 0, kind: input, shape index: {}]
  %s1 = inlined_call_operand.vmem [shape: f32[8,16,128], index: 1, kind: output, shape index: {}]
  %s2 = sld [smem:[#allocation0]]
  $region57: #{relative_pos_enc.1} parent=0
    _
  %s4 = ssub.s32 1, %s2
  %s5 = scalar_select 0, %s4, %s2
  $region1: #{relative_pos_enc.1} parent=0
    #allocation3 [shape = 'u8[4096]{0}', space=smem, size = 0x1000, scoped, tag = 'input window, operand 0, single buffered']
    #allocation4 [shape = 's32[2]{0}', space=sflag, size = 0x8, scoped, tag = 'scoped memory for relative_pos_enc.1']
    %6 = vsyncpa [#allocation4], 0
    loop: start=0, step=1, limit=10
    $region2: #{relative_pos_enc.1} parent=1 // loop_pre_header
      _
    $region3: #{relative_pos_enc.1} parent=1 // loop_header
      %s8 = sphi 0, %s12
      %p9 = scmp.ge.s32.totalorder %s8, 10
      %s15 = sphi 0, %s34
      %s16 = sphi 0, %s30
      %s17 = sphi 0, %s26
      %s18 = sphi 0, %s15
      %s19 = sphi 0, %s16
      %s20 = sphi 0, %s17
      %s21 = sphi 0, %s18
      %s22 = sphi 0, %s19
      %s23 = sphi 0, %s20
      %s35 = sphi 0, %s35
      %s37 = sphi 0, %s35
      %s38 = sphi 0, %s37
      %s52 = sphi 0, %s38
      %s62 = sphi 0, %s64
      %s65 = sphi 0, %s62
      %s66 = sphi 0, %s65
      %s82 = sphi 0, %s66
    $region4: #{relative_pos_enc.1} parent=1 // loop_header_branch
      %11 = sbr.rel (%p9) target = $region8
    $region5: #{relative_pos_enc.1} parent=1 // loop_body
      %s13 = ssub.s32 %s8, 1
      %s14 = ssub.s32 %s8, 2
      %s24 = sadd.s32 1, %s17
      %p25 = scmp.ge.s32.totalorder %s24, 8
      %s26 = scalar_select %p25, 0, %s24
      %s27 = sadd.s32 1, %s16
      %s28 = scalar_select %p25, %s27, %s16
      %p29 = scmp.ge.s32.totalorder %s28, 1
      %s30 = scalar_select %p29, 0, %s28
      %s31 = sadd.s32 1, %s15
      %s32 = scalar_select %p29, %s31, %s15
      %p33 = scmp.ge.s32.totalorder %s32, 1
      %s34 = scalar_select %p33, 0, %s32
      %s36 = sadd.s32 %s35, 1
      %p39 = scmp.eq.s32.totalorder %s8, 7
      %p40 = scmp.ne.s32.totalorder %s35, %s37
      %p41 = scmp.eq.s32.totalorder %s8, 0
      %p42 = por %p40, %p41
      %p43 = scmp.ne.s32.totalorder %s35, %s37
      %p44 = scmp.eq.s32.totalorder %s13, 7
      %p45 = por %p43, %p44
      %p46 = scmp.ne.s32.totalorder %s37, %s38
      %p47 = scmp.eq.s32.totalorder %s13, 0
      %p48 = por %p46, %p47
      %p49 = scmp.ne.s32.totalorder %s37, %s38
      %p50 = scmp.eq.s32.totalorder %s14, 7
      %p51 = por %p49, %p50
      %p53 = scmp.ne.s32.totalorder %s38, %s52
      %p54 = scmp.eq.s32.totalorder %s14, 0
      %p55 = por %p53, %p54
      %s56 = ssub.s32 %s17, %s26
      %s57 = ssub.s32 %s15, %s34
      %s58 = sor.u32 %s56, %s57
      %s59 = ssub.s32 %s16, %s30
      %s60 = sor.u32 %s58, %s59
      %p61 = scmp.eq.s32.totalorder %s60, 0
      %s63 = sadd.s32 %s62, 1
      %s64 = scalar_select %p61, %s62, %s63
      %p67 = pneg %p61
      %p68 = scmp.eq.s32.totalorder %s8, 7
      %p69 = por %p67, %p68
      %p70 = scmp.ne.s32.totalorder %s62, %s65
      %p71 = scmp.eq.s32.totalorder %s8, 0
      %p72 = por %p70, %p71
      %p73 = scmp.ne.s32.totalorder %s62, %s65
      %p74 = scmp.eq.s32.totalorder %s13, 7
      %p75 = por %p73, %p74
      %p76 = scmp.ne.s32.totalorder %s65, %s66
      %p77 = scmp.eq.s32.totalorder %s13, 0
      %p78 = por %p76, %p77
      %p79 = scmp.ne.s32.totalorder %s65, %s66
      %p80 = scmp.eq.s32.totalorder %s14, 7
      %p81 = por %p79, %p80
      %p83 = scmp.ne.s32.totalorder %s66, %s82
      %p84 = scmp.eq.s32.totalorder %s14, 0
      %p85 = por %p83, %p84
      %p86 = scmp.le.s32.totalorder 1, %s8
      %p87 = scmp.lt.s32.totalorder %s8, 9
      %p88 = pnand %p86, %p87
      %p89 = pneg %p88
      // Predicated region
      $region9: #{relative_pos_enc.1} parent=5 // pred_check
        _
      $region10: #{relative_pos_enc.1} parent=5 // pred_check_branch
        %91 = sbr.rel (%p88) target = $region12
      $region11: #{relative_pos_enc.1} parent=5 // pred_region
        %s92 = ssub.s32 %s8, 1
        // Predicated region
        $region13: #{relative_pos_enc.1} parent=11 // pred_check
          %p93 = pneg %p48
        $region14: #{relative_pos_enc.1} parent=11 // pred_check_branch
          %95 = sbr.rel (%p93) target = $region16
        $region15: #{relative_pos_enc.1} parent=11 // pred_region
          %s97 = ssub.s32 128, 128
          %98 = vsyncadd [#allocation4], %s97
          %101 = dma.hbm_to_smem %s0, 128, [#allocation3], [#allocation4]
        $region16: #{relative_pos_enc.1} parent=11 // pred_fallthru
          _
      $region12: #{relative_pos_enc.1} parent=5 // pred_fallthru
        _
      %p102 = scmp.lt.s32.totalorder %s8, 8
      // Predicated region
      $region17: #{relative_pos_enc.1} parent=5 // pred_check
        %p103 = pneg %p102
      $region18: #{relative_pos_enc.1} parent=5 // pred_check_branch
        %105 = sbr.rel (%p103) target = $region20
      $region19: #{relative_pos_enc.1} parent=5 // pred_region
        _
      $region20: #{relative_pos_enc.1} parent=5 // pred_fallthru
        _
      %p106 = scmp.le.s32.totalorder 1, %s8
      %p107 = scmp.lt.s32.totalorder %s8, 9
      %p108 = pnand %p106, %p107
      %p109 = pneg %p108
      // Predicated region
      $region21: #{relative_pos_enc.1} parent=5 // pred_check
        _
      $region22: #{relative_pos_enc.1} parent=5 // pred_check_branch
        %111 = sbr.rel (%p108) target = $region24
      $region23: #{relative_pos_enc.1} parent=5 // pred_region
        %s112 = ssub.s32 %s8, 1
        // Predicated region
        $region25: #{relative_pos_enc.1} parent=23 // pred_check
          %p113 = pneg %p48
        $region26: #{relative_pos_enc.1} parent=23 // pred_check_branch
          %115 = sbr.rel (%p113) target = $region28
        $region27: #{relative_pos_enc.1} parent=23 // pred_region
          %116 = dma.done [#allocation4], 128
        $region28: #{relative_pos_enc.1} parent=23 // pred_fallthru
          _
        %117 = sfence
        %p118 = pneg %p48
        %p119 = pneg %p45
        %p120 = pneg %p78
        %p121 = pneg %p75
        %s122 = smul.u32 2, %s18
        %p123 = scmp.lt.s32.totalorder %s20, 7
        %s124 = scalar_select %p123, %s20, 7
        %p125 = scmp.lt.s32.totalorder %s122, 1
        %s126 = scalar_select %p125, %s122, 1
        %p127 = scmp.lt.s32.totalorder %s19, 0
        %s128 = scalar_select %p127, %s19, 0
        %s129 = sadd.s32 %s128, %s126
        %s130 = smul.addr %s124, 2
        %s131 = sadd.s32 %s129, %s130
        %s132 = smul.addr %s131, 8
        %s133 = scalar_lea.vmem %s1, %s132
        %s134 = smul.u32 2, %s18
        %p135 = scmp.lt.s32.totalorder %s20, 7
        %s136 = scalar_select %p135, %s20, 7
        %p137 = scmp.lt.s32.totalorder %s134, 1
        %s138 = scalar_select %p137, %s134, 1
        %p139 = scmp.lt.s32.totalorder %s19, 0
        %s140 = scalar_select %p139, %s19, 0
        %s141 = sadd.s32 %s140, %s138
        %s142 = smul.addr %s136, 2
        %s143 = sadd.s32 %s141, %s142
        %s144 = smul.addr %s143, 8
        %s145 = scalar_lea.vmem %s1, %s144
        %s146 = smul.u32 2, %s18
        %s147 = smul.u32 %s18, 16
        %s148 = smul.u32 %s19, 128
        %s149 = sadd.s32 %s147, 15
        %s150 = ssub.s32 %s148, %s149
        %s151 = sadd.s32 %s148, 127
        %s152 = ssub.s32 %s151, %s147
        %p153 = scmp.ge.s32.totalorder %s150, 2
        %p154 = scmp.le.s32.totalorder %s152, 4294967294
        %p155 = por %p153, %p154
        %p156 = pneg %p155
        // Predicated region
        $region29: #{relative_pos_enc.1} parent=23 // pred_check
          %p157 = pneg %p153
        $region30: #{relative_pos_enc.1} parent=23 // pred_check_branch
          %159 = sbr.rel (%p157) target = $region32
        $region31: #{relative_pos_enc.1} parent=23 // pred_region
          %s160 = smul.u32 %s20, 128
          %s161 = sadd.s32 %s160, 4
          %s162 = sld [smem:[#allocation3 + %s161]]
          %v163 = vstv %s162
          %164 = vst [vmem:[%s145] sm:$0xff] %v163
          %165 = vst [vmem:[%s145 + $0x8] sm:$0xff] %v163
        $region32: #{relative_pos_enc.1} parent=23 // pred_fallthru
          _
        // Predicated region
        $region33: #{relative_pos_enc.1} parent=23 // pred_check
          %p166 = pneg %p154
        $region34: #{relative_pos_enc.1} parent=23 // pred_check_branch
          %168 = sbr.rel (%p166) target = $region36
        $region35: #{relative_pos_enc.1} parent=23 // pred_region
          %s169 = smul.u32 %s20, 128
          %s170 = sld [smem:[#allocation3 + %s169]]
          %v171 = vstv %s170
          %172 = vst [vmem:[%s145] sm:$0xff] %v171
          %173 = vst [vmem:[%s145 + $0x8] sm:$0xff] %v171
        $region36: #{relative_pos_enc.1} parent=23 // pred_fallthru
          _
        %p174 = scmp.eq.s32.totalorder %s20, 0
        %p175 = pnand %p156, %p174
        %p176 = pneg %p175
        // Predicated region
        $region37: #{relative_pos_enc.1} parent=23 // pred_check
          _
        $region38: #{relative_pos_enc.1} parent=23 // pred_check_branch
          %178 = sbr.rel (%p175) target = $region40
        $region39: #{relative_pos_enc.1} parent=23 // pred_region
          %v179 = vlaneseq
          %v180 = vshrl.u32 %v179, 7
          %v181 = vadd.s32 %v180, 8
          %v182 = vstv %s147
          %v183 = vadd.s32 %v180, %v182
          %v184 = vadd.s32 %v181, %v182
          %v185 = vlaneseq
          %v186 = vand.u32 %v185, 127
          %v187 = vstv %s148
          %v188 = vadd.s32 %v186, %v187
          %v189 = vsub.s32 %v188, %v183
          %v190 = vsub.s32 %v188, %v184
          %vm191 = vcmp.gt.s32.totalorder %v189, 4294967294
          %v192 = vsel %vm191, %v189, 4294967294
          %vm193 = vcmp.gt.s32.totalorder %v190, 4294967294
          %v194 = vsel %vm193, %v190, 4294967294
          %vm195 = vcmp.lt.s32.totalorder %v192, 2
          %v196 = vsel %vm195, %v192, 2
          %vm197 = vcmp.lt.s32.totalorder %v194, 2
          %v198 = vsel %vm197, %v194, 2
          %v199 = vadd.s32 %v196, 2
          %v200 = vadd.s32 %v198, 2
          %201 = vst [vmem:[#allocation2] sm:$0xff] %v199
          %202 = vst [vmem:[#allocation2 + $0x8] sm:$0xff] %v200
        $region40: #{relative_pos_enc.1} parent=23 // pred_fallthru
          _
        // Predicated region
        $region41: #{relative_pos_enc.1} parent=23 // pred_check
          _
        $region42: #{relative_pos_enc.1} parent=23 // pred_check_branch
          %204 = sbr.rel (%p155) target = $region44
        $region43: #{relative_pos_enc.1} parent=23 // pred_region
          %v205 = vld [vmem:[#allocation2] sm:$0xff]
          %v206 = vld [vmem:[#allocation2 + $0x8] sm:$0xff]
          %s207 = smul.u32 %s20, 128
          %s208 = sld [smem:[#allocation3 + %s207]]
          %s209 = sadd.s32 %s207, 1
          %s210 = sld [smem:[#allocation3 + %s209]]
          %s211 = sadd.s32 %s207, 2
          %s212 = sld [smem:[#allocation3 + %s211]]
          %s213 = sadd.s32 %s207, 3
          %s214 = sld [smem:[#allocation3 + %s213]]
          %s215 = sadd.s32 %s207, 4
          %s216 = sld [smem:[#allocation3 + %s215]]
          %v217 = vstv %s208
          %vm218 = vcmp.eq.s32.totalorder %v205, 1
          %vm219 = vcmp.eq.s32.totalorder %v206, 1
          %v220 = vstv %s210
          %v221 = vsel %vm218, %v220, %v217
          %v222 = vsel %vm219, %v220, %v217
          %vm223 = vcmp.eq.s32.totalorder %v205, 2
          %vm224 = vcmp.eq.s32.totalorder %v206, 2
          %v225 = vstv %s212
          %v226 = vsel %vm223, %v225, %v221
          %v227 = vsel %vm224, %v225, %v222
          %vm228 = vcmp.eq.s32.totalorder %v205, 3
          %vm229 = vcmp.eq.s32.totalorder %v206, 3
          %v230 = vstv %s214
          %v231 = vsel %vm228, %v230, %v226
          %v232 = vsel %vm229, %v230, %v227
          %vm233 = vcmp.eq.s32.totalorder %v205, 4
          %vm234 = vcmp.eq.s32.totalorder %v206, 4
          %v235 = vstv %s216
          %v236 = vsel %vm233, %v235, %v231
          %v237 = vsel %vm234, %v235, %v232
          %238 = vst [vmem:[%s145] sm:$0xff] %v236
          %239 = vst [vmem:[%s145 + $0x8] sm:$0xff] %v237
        $region44: #{relative_pos_enc.1} parent=23 // pred_fallthru
          _
        %s240 = smul.u32 2, %s18
        %p241 = scmp.lt.s32.totalorder %s20, 7
        %s242 = scalar_select %p241, %s20, 7
        %p243 = scmp.lt.s32.totalorder %s240, 1
        %s244 = scalar_select %p243, %s240, 1
        %p245 = scmp.lt.s32.totalorder %s19, 0
        %s246 = scalar_select %p245, %s19, 0
        %s247 = sadd.s32 %s246, %s244
        %s248 = smul.addr %s242, 2
        %s249 = sadd.s32 %s247, %s248
        %s250 = smul.addr %s249, 8
        %s251 = scalar_lea.vmem %s1, %s250
        // Predicated region
        $region45: #{relative_pos_enc.1} parent=23 // pred_check
          %p252 = pneg %p75
        $region46: #{relative_pos_enc.1} parent=23 // pred_check_branch
          %254 = sbr.rel (%p252) target = $region48
        $region47: #{relative_pos_enc.1} parent=23 // pred_region
          %s255 = smul.u32 2, %s18
        $region48: #{relative_pos_enc.1} parent=23 // pred_fallthru
          _
      $region24: #{relative_pos_enc.1} parent=5 // pred_fallthru
        _
      %p256 = scmp.le.s32.totalorder 2, %s8
      // Predicated region
      $region49: #{relative_pos_enc.1} parent=5 // pred_check
        %p257 = pneg %p256
      $region50: #{relative_pos_enc.1} parent=5 // pred_check_branch
        %259 = sbr.rel (%p257) target = $region52
      $region51: #{relative_pos_enc.1} parent=5 // pred_region
        %s260 = ssub.s32 %s8, 2
        // Predicated region
        $region53: #{relative_pos_enc.1} parent=51 // pred_check
          %p261 = pneg %p81
        $region54: #{relative_pos_enc.1} parent=51 // pred_check_branch
          %263 = sbr.rel (%p261) target = $region56
        $region55: #{relative_pos_enc.1} parent=51 // pred_region
          %s264 = smul.u32 2, %s21
          %p265 = scmp.lt.s32.totalorder %s23, 7
          %s266 = scalar_select %p265, %s23, 7
          %p267 = scmp.lt.s32.totalorder %s264, 1
          %s268 = scalar_select %p267, %s264, 1
          %p269 = scmp.lt.s32.totalorder %s22, 0
          %s270 = scalar_select %p269, %s22, 0
          %s271 = sadd.s32 %s270, %s268
          %s272 = smul.addr %s266, 2
          %s273 = sadd.s32 %s271, %s272
          %s274 = smul.addr %s273, 8
          %s275 = scalar_lea.vmem %s1, %s274
        $region56: #{relative_pos_enc.1} parent=51 // pred_fallthru
          _
      $region52: #{relative_pos_enc.1} parent=5 // pred_fallthru
        _
    $region6: #{relative_pos_enc.1} parent=1 // loop_footer
      %s12 = sadd.s32 1, %s8
    $region7: #{relative_pos_enc.1} parent=1 // loop_footer_branch
      %7 = sbr.rel target = $region3
    $region8: #{relative_pos_enc.1} parent=1 // loop_exit
      _
    %276 = vsyncpa [#allocation4], 1
    %s277 = scalar_lea.sflag [#allocation4], 1
    %278 = vsyncpa %s277, 1

</llo_original>
